<compile_context>
chip_gen: v7x
topology: tpu7x:2x2x1
jax: 0.10.0
libtpu: 0.0.40
codegen_flags: <defaults>
</compile_context>

<pallas_src>
import jax
import jax.numpy as jnp
from jax import lax
from jax.experimental import pallas as pl
from jax.experimental.pallas import tpu as pltpu

LN_EPS = 1e-12


# --------------------------------- kernel ------------------------------------

def _self_output_kernel(h_ref, res_ref, w_ref, p_ref, out_ref):
    """One (row_tile, H) tile of: LayerNorm(h @ W + b + residual) * gamma + beta.

    p_ref is the packed (3, H) f32 slab [bias; gamma; beta].
    Dropout is eval-mode identity.
    """
    # bf16 x bf16 matmul on the MXU, f32 accumulation.  The cast happens here
    # (inside the kernel) so the wrapper never does an extra HBM pass.
    y = jnp.dot(h_ref[...].astype(jnp.bfloat16), w_ref[...],
                preferred_element_type=jnp.float32)

    bias = p_ref[0:1, :]
    gamma = p_ref[1:2, :]
    beta = p_ref[2:3, :]

    # Bias + residual add and LayerNorm in f32 (biased variance, eps inside
    # the sqrt, matching BertLayerNorm).
    y = y + bias + res_ref[...].astype(jnp.float32)
    u = jnp.mean(y, axis=-1, keepdims=True)
    yc = y - u                                            # materialized once
    var = jnp.mean(yc * yc, axis=-1, keepdims=True)
    yn = yc * lax.rsqrt(var + LN_EPS)                     # rsqrt -> EUP slot
    out_ref[...] = (yn * gamma + beta).astype(out_ref.dtype)


# -------------------------------- wrapper -------------------------------------

def bert_self_output(hidden_states, input_tensor, params, *,
                     row_tile=512, out_dtype=None):
    """hidden_states, input_tensor: (B, S, H) -> (B, S, H).

    params: {"w": (H, H) so that y = x @ w + b (i.e. torch Linear weight.T),
             "b": (H,), "gamma": (H,), "beta": (H,)}
    """
    B, S, H = hidden_states.shape
    M = B * S
    out_dtype = hidden_states.dtype if out_dtype is None else jnp.dtype(out_dtype)

    # Metadata-only reshapes; no dtype conversion / padding of activations.
    h2 = hidden_states.reshape(M, H)
    r2 = input_tensor.reshape(M, H)

    # Weight is grid-invariant and tiny relative to activations: one-time bf16
    # cast in the wrapper (avoids re-casting it every grid step in-kernel).
    w = params["w"].astype(jnp.bfloat16)
    # Pack bias/gamma/beta into one (3, H) slab -> single grid-invariant DMA.
    pslab = jnp.stack([params["b"].astype(jnp.float32),
                       params["gamma"].astype(jnp.float32),
                       params["beta"].astype(jnp.float32)], axis=0)

    # Row tile: multiple of 8 sublanes, no larger than the (8-rounded) row
    # count, and clamped so the grid keeps >= ~8 steps (megacore balance on
    # v7x under dimension_semantics=("parallel",)).
    row_tile = max(8, (min(int(row_tile), ((M + 7) // 8) * 8) // 8) * 8)
    steps_cap = max(8, ((pl.cdiv(M, 8) + 7) // 8) * 8)
    row_tile = min(row_tile, steps_cap)
    grid = (pl.cdiv(M, row_tile),)

    # Scoped-VMEM budget: double-buffered activation tiles + (possibly
    # double-buffered) grid-invariant weight slab + room for the f32
    # intermediates (y / yc / bf16 copy) + fixed headroom; clamped to 48 MiB
    # to stay well under v7x's 64 MiB physical VMEM per TensorCore.
    in_b = jnp.dtype(hidden_states.dtype).itemsize
    res_b = jnp.dtype(input_tensor.dtype).itemsize
    out_b = jnp.dtype(out_dtype).itemsize
    act_bytes = row_tile * H * (in_b + res_b + out_b)
    wgt_bytes = H * H * 2 + 3 * H * 4
    scratch_bytes = 3 * row_tile * H * 4
    vmem_limit = int(min(max(2 * act_bytes + 2 * wgt_bytes + scratch_bytes
                             + (4 << 20), 8 << 20), 48 << 20))

    out = pl.pallas_call(
        _self_output_kernel,
        out_shape=jax.ShapeDtypeStruct((M, H), out_dtype),
        grid=grid,
        in_specs=[
            pl.BlockSpec((row_tile, H), lambda i: (i, 0)),   # hidden states
            pl.BlockSpec((row_tile, H), lambda i: (i, 0)),   # residual
            pl.BlockSpec((H, H), lambda i: (0, 0)),          # W (grid-invariant)
            pl.BlockSpec((3, H), lambda i: (0, 0)),          # bias/gamma/beta slab
        ],
        out_specs=pl.BlockSpec((row_tile, H), lambda i: (i, 0)),
        compiler_params=pltpu.CompilerParams(
            dimension_semantics=("parallel",),
            vmem_limit_bytes=vmem_limit,
        ),
    )(h2, r2, w, pslab)

    return out.reshape(B, S, H)


# ----------------------------- pure-JAX reference -----------------------------

def bert_self_output_ref(hidden_states, input_tensor, params):
    with jax.default_matmul_precision("highest"):
        y = hidden_states @ params["w"] + params["b"].reshape(1, 1, -1)
        y = y + input_tensor
        u = y.mean(-1, keepdims=True)
        s = ((y - u) ** 2).mean(-1, keepdims=True)
        return (y - u) / jnp.sqrt(s + LN_EPS) * params["gamma"] + params["beta"]


# ---------------------------------- main --------------------------------------

if __name__ == "__main__":
    # TODO(synk): training-mode dropout (hidden_dropout_prob) is not
    # implemented; this kernel is the eval-mode (identity dropout) forward.
    B, S, H = 2, 8, 32

    key = jax.random.PRNGKey(0)
    k1, k2, k3, k4 = jax.random.split(key, 4)

    params = {
        "w": (0.02 * jax.random.normal(k1, (H, H))).astype(jnp.float32),
        "b": (0.02 * jax.random.normal(k2, (H,))).astype(jnp.float32),
        "gamma": jnp.ones((H,), jnp.float32),
        "beta": jnp.zeros((H,), jnp.float32),
    }

    hidden = jax.random.normal(k3, (B, S, H), jnp.float32)     # attention output
    residual = jax.random.normal(k4, (B, S, H), jnp.float32)   # input_tensor

    out = bert_self_output(hidden, residual, params)
    out = jax.block_until_ready(out)

    ref = bert_self_output_ref(hidden, residual, params)
    assert out.shape == (B, S, H)
    err = float(jnp.max(jnp.abs(out - ref)))
    # bf16 matmul operands with f32 accumulation -> slightly looser tolerance.
    assert jnp.allclose(out, ref, atol=2e-2, rtol=2e-2), f"max abs err {err}"

    print("KERNEL_OK")
</pallas_src>

<mosaic_0001>
module attributes {stable_mosaic.version = 11 : i64} {
  func.func @_self_output_kernel(%arg0: i32, %arg1: memref<8x32xf32, #tpu.memory_space<vmem>>, %arg2: memref<8x32xf32, #tpu.memory_space<vmem>>, %arg3: memref<32x32xbf16, #tpu.memory_space<vmem>>, %arg4: memref<3x32xf32, #tpu.memory_space<vmem>>, %arg5: memref<8x32xf32, #tpu.memory_space<vmem>>) attributes {dimension_semantics = [#tpu.dimension_semantics<parallel>], iteration_bounds = array<i64: 2>, scalar_prefetch = 0 : i64, scratch_operands = 0 : i64, tpu.core_type = #tpu.core_type<tc>, window_params = [{transform_indices = @transform_0, window_bounds = array<i64: 8, 32>}, {transform_indices = @transform_1, window_bounds = array<i64: 8, 32>}, {pipeline_mode = #tpu.pipeline_mode<synchronous>, transform_indices = @transform_2, window_bounds = array<i64: 32, 32>}, {pipeline_mode = #tpu.pipeline_mode<synchronous>, transform_indices = @transform_3, window_bounds = array<i64: 3, 32>}, {transform_indices = @transform_4, window_bounds = array<i64: 8, 32>}]} {
    %c0 = arith.constant 0 : index
    %c0_0 = arith.constant 0 : index
    %0 = vector.load %arg1[%c0, %c0_0] : memref<8x32xf32, #tpu.memory_space<vmem>>, vector<8x32xf32>
    %1 = arith.truncf %0 : vector<8x32xf32> to vector<8x32xbf16>
    %c0_1 = arith.constant 0 : index
    %c0_2 = arith.constant 0 : index
    %2 = vector.load %arg3[%c0_1, %c0_2] : memref<32x32xbf16, #tpu.memory_space<vmem>>, vector<32x32xbf16>
    %cst = arith.constant dense<0.000000e+00> : vector<8x32xf32>
    %3 = tpu.matmul %1, %2, %cst {dimension_numbers = #tpu.dot_dimension_numbers<[1], [0], [0], [1], [0, 0, 1, 1], [], []>} : vector<8x32xbf16>, vector<32x32xbf16>, vector<8x32xf32> -> vector<8x32xf32>
    %c0_3 = arith.constant 0 : index
    %c0_4 = arith.constant 0 : index
    %4 = vector.load %arg4[%c0_3, %c0_4] : memref<3x32xf32, #tpu.memory_space<vmem>>, vector<1x32xf32>
    %c1 = arith.constant 1 : index
    %c0_5 = arith.constant 0 : index
    %5 = vector.load %arg4[%c1, %c0_5] : memref<3x32xf32, #tpu.memory_space<vmem>>, vector<1x32xf32>
    %c2 = arith.constant 2 : index
    %c0_6 = arith.constant 0 : index
    %6 = vector.load %arg4[%c2, %c0_6] : memref<3x32xf32, #tpu.memory_space<vmem>>, vector<1x32xf32>
    %7 = vector.broadcast %4 : vector<1x32xf32> to vector<8x32xf32>
    %8 = arith.addf %3, %7 : vector<8x32xf32>
    %c0_7 = arith.constant 0 : index
    %c0_8 = arith.constant 0 : index
    %9 = vector.load %arg2[%c0_7, %c0_8] : memref<8x32xf32, #tpu.memory_space<vmem>>, vector<8x32xf32>
    %10 = arith.addf %8, %9 : vector<8x32xf32>
    %cst_9 = arith.constant dense<0.000000e+00> : vector<8xf32>
    %11 = vector.multi_reduction <add>, %10, %cst_9 [1] : vector<8x32xf32> to vector<8xf32>
    %12 = vector.shape_cast %11 : vector<8xf32> to vector<8x1xf32>
    %cst_10 = arith.constant 3.200000e+01 : f32
    %13 = vector.broadcast %cst_10 : f32 to vector<8x1xf32>
    %14 = arith.divf %12, %13 : vector<8x1xf32>
    %15 = vector.broadcast %14 : vector<8x1xf32> to vector<8x32xf32>
    %16 = arith.subf %10, %15 : vector<8x32xf32>
    %17 = arith.mulf %16, %16 : vector<8x32xf32>
    %cst_11 = arith.constant dense<0.000000e+00> : vector<8xf32>
    %18 = vector.multi_reduction <add>, %17, %cst_11 [1] : vector<8x32xf32> to vector<8xf32>
    %19 = vector.shape_cast %18 : vector<8xf32> to vector<8x1xf32>
    %cst_12 = arith.constant 3.200000e+01 : f32
    %20 = vector.broadcast %cst_12 : f32 to vector<8x1xf32>
    %21 = arith.divf %19, %20 : vector<8x1xf32>
    %cst_13 = arith.constant 9.99999996E-13 : f32
    %22 = vector.broadcast %cst_13 : f32 to vector<8x1xf32>
    %23 = arith.addf %21, %22 : vector<8x1xf32>
    %24 = math.rsqrt %23 : vector<8x1xf32>
    %25 = vector.broadcast %24 : vector<8x1xf32> to vector<8x32xf32>
    %26 = arith.mulf %16, %25 : vector<8x32xf32>
    %27 = vector.broadcast %5 : vector<1x32xf32> to vector<8x32xf32>
    %28 = arith.mulf %26, %27 : vector<8x32xf32>
    %29 = vector.broadcast %6 : vector<1x32xf32> to vector<8x32xf32>
    %30 = arith.addf %28, %29 : vector<8x32xf32>
    %c0_14 = arith.constant 0 : index
    %c0_15 = arith.constant 0 : index
    %31 = vector.load %arg5[%c0_14, %c0_15] : memref<8x32xf32, #tpu.memory_space<vmem>>, vector<8x32xf32>
    tpu.vector_store %arg5[%c0_14, %c0_15], %30 {strides = array<i32>} : memref<8x32xf32, #tpu.memory_space<vmem>>, vector<8x32xf32>,
    return
  }
  func.func @transform_0(%arg0: i32) -> (i32, i32) {
    %c0_i32 = arith.constant 0 : i32
    %c0_i32_0 = arith.constant 0 : i32
    return %arg0, %c0_i32 : i32, i32
  }
  func.func @transform_1(%arg0: i32) -> (i32, i32) {
    %c0_i32 = arith.constant 0 : i32
    %c0_i32_0 = arith.constant 0 : i32
    return %arg0, %c0_i32 : i32, i32
  }
  func.func @transform_2(%arg0: i32) -> (i32, i32) {
    %c0_i32 = arith.constant 0 : i32
    %c0_i32_0 = arith.constant 0 : i32
    %c0_i32_1 = arith.constant 0 : i32
    return %c0_i32, %c0_i32_0 : i32, i32
  }
  func.func @transform_3(%arg0: i32) -> (i32, i32) {
    %c0_i32 = arith.constant 0 : i32
    %c0_i32_0 = arith.constant 0 : i32
    %c0_i32_1 = arith.constant 0 : i32
    return %c0_i32, %c0_i32_0 : i32, i32
  }
  func.func @transform_4(%arg0: i32) -> (i32, i32) {
    %c0_i32 = arith.constant 0 : i32
    %c0_i32_0 = arith.constant 0 : i32
    return %arg0, %c0_i32 : i32, i32
  }
}

</mosaic_0001>

<llo_original>
// kernel: tpu_custom_call.1
$region0: #{tpu_custom_call.1}
  #allocation0 [shape = 'u32[]', space=smem, size = 0x4, offset = 0x4, fixed_abs, tag = 'smem constant byte address 0x4 - core index']
  #allocation1 [shape = 'u32[144,128]{1,0:T(1,128)}', space=vmem, size = 0x12000, scoped, tag = 'internal scratch']
  %s0 = inlined_call_operand.hbm [shape: f32[16,32], index: 0, kind: input, shape index: {}]
  %s1 = inlined_call_operand.hbm [shape: f32[16,32], index: 1, kind: input, shape index: {}]
  %s2 = inlined_call_operand.hbm [shape: bf16[32,32], index: 2, kind: input, shape index: {}]
  %s3 = inlined_call_operand.vmem [shape: f32[3,32], index: 3, kind: input, shape index: {}]
  %s4 = inlined_call_operand.hbm [shape: f32[16,32], index: 4, kind: output, shape index: {}]
  %s5 = sld [smem:[#allocation0]]
  $region61: #{tpu_custom_call.1} parent=0
    _
  %s7 = ssub.s32 1, %s5
  %s8 = scalar_select 0, %s7, %s5
  $region1: #{tpu_custom_call.1} parent=0
    #allocation2 [shape = 'u8[8192]{0}', space=vmem, size = 0x2000, scoped, tag = 'input window, operand 0']
    #allocation3 [shape = 's32[2]{0}', space=sflag, size = 0x8, scoped, tag = 'scoped memory for tpu_custom_call.1']
    #allocation4 [shape = 's32[2]{0}', space=sflag, size = 0x8, scoped, tag = 'scoped memory for tpu_custom_call.1']
    #allocation5 [shape = 'u8[8192]{0}', space=vmem, size = 0x2000, scoped, tag = 'input window, operand 1']
    #allocation6 [shape = 's32[2]{0}', space=sflag, size = 0x8, scoped, tag = 'scoped memory for tpu_custom_call.1']
    #allocation7 [shape = 'u8[8192]{0}', space=vmem, size = 0x2000, scoped, tag = 'input window, operand 2, single buffered']
    #allocation8 [shape = 'u8[8192]{0}', space=vmem, size = 0x2000, scoped, tag = 'output window, operand 0']
    %9 = vsyncpa [#allocation3], 0
    %s10 = scalar_lea.sflag [#allocation3], 1
    %11 = vsyncpa %s10, 0
    %12 = vsyncpa [#allocation6], 0
    %s13 = scalar_lea.sflag [#allocation6], 1
    %14 = vsyncpa %s13, 0
    %15 = vsyncpa [#allocation4], 0
    %s16 = scalar_lea.sflag [#allocation4], 1
    %17 = vsyncpa %s16, 0
    loop: start=0, step=1, limit=4
    $region2: #{tpu_custom_call.1} parent=1 // loop_pre_header
      _
    $region3: #{tpu_custom_call.1} parent=1 // loop_header
      %s19 = sphi 0, %s23
      %p20 = scmp.ge.s32.totalorder %s19, 4
      %s29 = sphi 0, %s31
      %s32 = sphi 0, %s29
      %s33 = sphi 0, %s32
      %s49 = sphi 0, %s33
      %s55 = sphi 0, %s57
      %s58 = sphi 0, %s55
      %s59 = sphi 0, %s58
      %s75 = sphi 0, %s59
      %s79 = sphi 0, %s79
      %s81 = sphi 0, %s79
      %s82 = sphi 0, %s81
      %s96 = sphi 0, %s82
      %s100 = sphi 0, %s100
      %s102 = sphi 0, %s100
      %s103 = sphi 0, %s102
      %s117 = sphi 0, %s103
      %s123 = sphi 0, %s125
      %s126 = sphi 0, %s123
      %s127 = sphi 0, %s126
      %s143 = sphi 0, %s127
    $region4: #{tpu_custom_call.1} parent=1 // loop_header_branch
      %22 = sbr.rel (%p20) target = $region8
    $region5: #{tpu_custom_call.1} parent=1 // loop_body
      %s24 = ssub.s32 %s19, 1
      %s25 = ssub.s32 %s19, 2
      %s26 = sadd.s32 %s19, 1
      %s27 = ssub.s32 %s19, %s26
      %p28 = scmp.eq.s32.totalorder %s27, 0
      %s30 = sadd.s32 %s29, 1
      %s31 = scalar_select %p28, %s29, %s30
      %p34 = pneg %p28
      %p35 = scmp.eq.s32.totalorder %s19, 1
      %p36 = por %p34, %p35
      %p37 = scmp.ne.s32.totalorder %s29, %s32
      %p38 = scmp.eq.s32.totalorder %s19, 0
      %p39 = por %p37, %p38
      %p40 = scmp.ne.s32.totalorder %s29, %s32
      %p41 = scmp.eq.s32.totalorder %s24, 1
      %p42 = por %p40, %p41
      %p43 = scmp.ne.s32.totalorder %s32, %s33
      %p44 = scmp.eq.s32.totalorder %s24, 0
      %p45 = por %p43, %p44
      %p46 = scmp.ne.s32.totalorder %s32, %s33
      %p47 = scmp.eq.s32.totalorder %s25, 1
      %p48 = por %p46, %p47
      %p50 = scmp.ne.s32.totalorder %s33, %s49
      %p51 = scmp.eq.s32.totalorder %s25, 0
      %p52 = por %p50, %p51
      %s53 = ssub.s32 %s19, %s26
      %p54 = scmp.eq.s32.totalorder %s53, 0
      %s56 = sadd.s32 %s55, 1
      %s57 = scalar_select %p54, %s55, %s56
      %p60 = pneg %p54
      %p61 = scmp.eq.s32.totalorder %s19, 1
      %p62 = por %p60, %p61
      %p63 = scmp.ne.s32.totalorder %s55, %s58
      %p64 = scmp.eq.s32.totalorder %s19, 0
      %p65 = por %p63, %p64
      %p66 = scmp.ne.s32.totalorder %s55, %s58
      %p67 = scmp.eq.s32.totalorder %s24, 1
      %p68 = por %p66, %p67
      %p69 = scmp.ne.s32.totalorder %s58, %s59
      %p70 = scmp.eq.s32.totalorder %s24, 0
      %p71 = por %p69, %p70
      %p72 = scmp.ne.s32.totalorder %s58, %s59
      %p73 = scmp.eq.s32.totalorder %s25, 1
      %p74 = por %p72, %p73
      %p76 = scmp.ne.s32.totalorder %s59, %s75
      %p77 = scmp.eq.s32.totalorder %s25, 0
      %p78 = por %p76, %p77
      %s80 = sadd.s32 %s79, 1
      %p83 = scmp.eq.s32.totalorder %s19, 1
      %p84 = scmp.ne.s32.totalorder %s79, %s81
      %p85 = scmp.eq.s32.totalorder %s19, 0
      %p86 = por %p84, %p85
      %p87 = scmp.ne.s32.totalorder %s79, %s81
      %p88 = scmp.eq.s32.totalorder %s24, 1
      %p89 = por %p87, %p88
      %p90 = scmp.ne.s32.totalorder %s81, %s82
      %p91 = scmp.eq.s32.totalorder %s24, 0
      %p92 = por %p90, %p91
      %p93 = scmp.ne.s32.totalorder %s81, %s82
      %p94 = scmp.eq.s32.totalorder %s25, 1
      %p95 = por %p93, %p94
      %p97 = scmp.ne.s32.totalorder %s82, %s96
      %p98 = scmp.eq.s32.totalorder %s25, 0
      %p99 = por %p97, %p98
      %s101 = sadd.s32 %s100, 1
      %p104 = scmp.eq.s32.totalorder %s19, 1
      %p105 = scmp.ne.s32.totalorder %s100, %s102
      %p106 = scmp.eq.s32.totalorder %s19, 0
      %p107 = por %p105, %p106
      %p108 = scmp.ne.s32.totalorder %s100, %s102
      %p109 = scmp.eq.s32.totalorder %s24, 1
      %p110 = por %p108, %p109
      %p111 = scmp.ne.s32.totalorder %s102, %s103
      %p112 = scmp.eq.s32.totalorder %s24, 0
      %p113 = por %p111, %p112
      %p114 = scmp.ne.s32.totalorder %s102, %s103
      %p115 = scmp.eq.s32.totalorder %s25, 1
      %p116 = por %p114, %p115
      %p118 = scmp.ne.s32.totalorder %s103, %s117
      %p119 = scmp.eq.s32.totalorder %s25, 0
      %p120 = por %p118, %p119
      %s121 = ssub.s32 %s19, %s26
      %p122 = scmp.eq.s32.totalorder %s121, 0
      %s124 = sadd.s32 %s123, 1
      %s125 = scalar_select %p122, %s123, %s124
      %p128 = pneg %p122
      %p129 = scmp.eq.s32.totalorder %s19, 1
      %p130 = por %p128, %p129
      %p131 = scmp.ne.s32.totalorder %s123, %s126
      %p132 = scmp.eq.s32.totalorder %s19, 0
      %p133 = por %p131, %p132
      %p134 = scmp.ne.s32.totalorder %s123, %s126
      %p135 = scmp.eq.s32.totalorder %s24, 1
      %p136 = por %p134, %p135
      %p137 = scmp.ne.s32.totalorder %s126, %s127
      %p138 = scmp.eq.s32.totalorder %s24, 0
      %p139 = por %p137, %p138
      %p140 = scmp.ne.s32.totalorder %s126, %s127
      %p141 = scmp.eq.s32.totalorder %s25, 1
      %p142 = por %p140, %p141
      %p144 = scmp.ne.s32.totalorder %s127, %s143
      %p145 = scmp.eq.s32.totalorder %s25, 0
      %p146 = por %p144, %p145
      %p147 = scmp.le.s32.totalorder 1, %s19
      %p148 = scmp.lt.s32.totalorder %s19, 3
      %p149 = pnand %p147, %p148
      %p150 = pneg %p149
      // Predicated region
      $region9: #{tpu_custom_call.1} parent=5 // pred_check
        _
      $region10: #{tpu_custom_call.1} parent=5 // pred_check_branch
        %152 = sbr.rel (%p149) target = $region12
      $region11: #{tpu_custom_call.1} parent=5 // pred_region
        %s153 = ssub.s32 %s19, 1
        // Predicated region
        $region13: #{tpu_custom_call.1} parent=11 // pred_check
          %p154 = pneg %p92
        $region14: #{tpu_custom_call.1} parent=11 // pred_check_branch
          %156 = sbr.rel (%p154) target = $region16
        $region15: #{tpu_custom_call.1} parent=11 // pred_region
          %s158 = ssub.s32 256, 256
          %159 = vsyncadd [#allocation6], %s158
          %s160 = sshll.u32 [#allocation7], 4
          %s161 = int_to_ptr.vmem [resolvable:$true] %s160
          %166 = dma.hbm_to_vmem [thread:$0]  %s2, 256, %s161, [#allocation6], 64, 64, 4
        $region16: #{tpu_custom_call.1} parent=11 // pred_fallthru
          _
        // Predicated region
        $region17: #{tpu_custom_call.1} parent=11 // pred_check
          %p167 = pneg %p113
        $region18: #{tpu_custom_call.1} parent=11 // pred_check_branch
          %169 = sbr.rel (%p167) target = $region20
        $region19: #{tpu_custom_call.1} parent=11 // pred_region
          _
        $region20: #{tpu_custom_call.1} parent=11 // pred_fallthru
          _
      $region12: #{tpu_custom_call.1} parent=5 // pred_fallthru
        _
      %p170 = scmp.lt.s32.totalorder %s19, 2
      // Predicated region
      $region21: #{tpu_custom_call.1} parent=5 // pred_check
        %p171 = pneg %p170
      $region22: #{tpu_custom_call.1} parent=5 // pred_check_branch
        %173 = sbr.rel (%p171) target = $region24
      $region23: #{tpu_custom_call.1} parent=5 // pred_region
        // Predicated region
        $region25: #{tpu_custom_call.1} parent=23 // pred_check
          %p174 = pneg %p39
        $region26: #{tpu_custom_call.1} parent=23 // pred_check_branch
          %176 = sbr.rel (%p174) target = $region28
        $region27: #{tpu_custom_call.1} parent=23 // pred_region
          %s177 = sand.u32 %s29, 1
          %s178 = scalar_lea.sflag [#allocation3], %s177
          %s179 = sand.u32 %s29, 1
          %s180 = smul.addr %s179, 8
          %s181 = scalar_lea.vmem [#allocation2], %s180
          %s183 = ssub.s32 128, 128
          %184 = vsyncadd %s178, %s183
          %s185 = smul.addr %s19, 128
          %s186 = scalar_lea.hbm %s0, %s185
          %s188 = sshll.u32 %s181, 4
          %s189 = int_to_ptr.vmem [resolvable:$true] %s188
          %191 = dma.hbm_to_vmem [thread:$0]  %s186, 128, %s189, %s178
        $region28: #{tpu_custom_call.1} parent=23 // pred_fallthru
          _
        // Predicated region
        $region29: #{tpu_custom_call.1} parent=23 // pred_check
          %p192 = pneg %p65
        $region30: #{tpu_custom_call.1} parent=23 // pred_check_branch
          %194 = sbr.rel (%p192) target = $region32
        $region31: #{tpu_custom_call.1} parent=23 // pred_region
          %s195 = sand.u32 %s19, 1
          %s196 = scalar_lea.sflag [#allocation6], %s195
          %s197 = sand.u32 %s55, 1
          %s198 = smul.addr %s197, 8
          %s199 = scalar_lea.vmem [#allocation5], %s198
          %s201 = ssub.s32 128, 128
          %202 = vsyncadd %s196, %s201
          %s203 = smul.addr %s19, 128
          %s204 = scalar_lea.hbm %s1, %s203
          %s206 = sshll.u32 %s199, 4
          %s207 = int_to_ptr.vmem [resolvable:$true] %s206
          %209 = dma.hbm_to_vmem [thread:$0]  %s204, 128, %s207, %s196
        $region32: #{tpu_custom_call.1} parent=23 // pred_fallthru
          _
      $region24: #{tpu_custom_call.1} parent=5 // pred_fallthru
        _
      %p210 = scmp.le.s32.totalorder 1, %s19
      %p211 = scmp.lt.s32.totalorder %s19, 3
      %p212 = pnand %p210, %p211
      %p213 = pneg %p212
      // Predicated region
      $region33: #{tpu_custom_call.1} parent=5 // pred_check
        _
      $region34: #{tpu_custom_call.1} parent=5 // pred_check_branch
        %215 = sbr.rel (%p212) target = $region36
      $region35: #{tpu_custom_call.1} parent=5 // pred_region
        %s216 = ssub.s32 %s19, 1
        %s217 = sand.u32 %s32, 1
        %s218 = scalar_lea.sflag [#allocation3], %s217
        %s219 = sand.u32 %s32, 1
        %s220 = smul.addr %s219, 8
        %s221 = scalar_lea.vmem [#allocation2], %s220
        // Predicated region
        $region37: #{tpu_custom_call.1} parent=35 // pred_check
          %p222 = pneg %p45
        $region38: #{tpu_custom_call.1} parent=35 // pred_check_branch
          %224 = sbr.rel (%p222) target = $region40
        $region39: #{tpu_custom_call.1} parent=35 // pred_region
          %225 = dma.done %s218, 128
        $region40: #{tpu_custom_call.1} parent=35 // pred_fallthru
          _
        %s226 = sand.u32 %s24, 1
        %s227 = scalar_lea.sflag [#allocation6], %s226
        %s228 = sand.u32 %s58, 1
        %s229 = smul.addr %s228, 8
        %s230 = scalar_lea.vmem [#allocation5], %s229
        // Predicated region
        $region41: #{tpu_custom_call.1} parent=35 // pred_check
          %p231 = pneg %p71
        $region42: #{tpu_custom_call.1} parent=35 // pred_check_branch
          %233 = sbr.rel (%p231) target = $region44
        $region43: #{tpu_custom_call.1} parent=35 // pred_region
          %234 = dma.done %s227, 128
        $region44: #{tpu_custom_call.1} parent=35 // pred_fallthru
          _
        // Predicated region
        $region45: #{tpu_custom_call.1} parent=35 // pred_check
          %p235 = pneg %p92
        $region46: #{tpu_custom_call.1} parent=35 // pred_check_branch
          %237 = sbr.rel (%p235) target = $region48
        $region47: #{tpu_custom_call.1} parent=35 // pred_region
          %238 = dma.done [#allocation6], 256
        $region48: #{tpu_custom_call.1} parent=35 // pred_fallthru
          _
        %s239 = sand.u32 %s32, 1
        %s240 = scalar_lea.sflag [#allocation3], %s239
        %s241 = sand.u32 %s32, 1
        %s242 = smul.addr %s241, 8
        %s243 = scalar_lea.vmem [#allocation2], %s242
        %p244 = pneg %p45
        %p245 = pneg %p42
        %s246 = sand.u32 %s24, 1
        %s247 = scalar_lea.sflag [#allocation6], %s246
        %s248 = sand.u32 %s58, 1
        %s249 = smul.addr %s248, 8
        %s250 = scalar_lea.vmem [#allocation5], %s249
        %p251 = pneg %p71
        %p252 = pneg %p68
        %p253 = pneg %p92
        %p254 = pneg %p89
        %p255 = pneg %p113
        %p256 = pneg %p110
        %p257 = pneg %p139
        %p258 = pneg %p136
        %s259 = sand.u32 %s126, 1
        %s260 = scalar_lea.sflag [#allocation4], %s259
        %s261 = sand.u32 %s126, 1
        %s262 = smul.addr %s261, 8
        %s263 = scalar_lea.vmem [#allocation8], %s262
        %v265 = vld [vmem:[%s221] sm:$0xff]
        %v266 = vpack.c.bf16 %v265, %v265
        %v267 = vld [vmem:[#allocation7] sm:$0xf]
        %v268 = vld [vmem:[#allocation7 + $0x4] sm:$0xf]
        %v269 = vld [vmem:[#allocation7 + $0x8] sm:$0xf]
        %v270 = vld [vmem:[#allocation7 + $0xc] sm:$0xf]
        %v271 = vld [vmem:[%s3] sm:$0x1]
        %v272 = vld [vmem:[%s3 + $0x1] sm:$0x1]
        %v273 = vld [vmem:[%s3 + $0x2] sm:$0x1]
        %v274 = vlaneseq
        %v275 = vshrl.u32 %v274, 7
        %v276 = vsub.s32 0, %v275
        %v277 = vrot.slane %v271, %v276
        %v282 = vunpack.c.l.b16 %v267
        %v283 = vunpack.c.l.b16 %v268
        %v284 = vunpack.c.l.b16 %v269
        %v285 = vunpack.c.l.b16 %v270
        %v286 = vpack.c.b16 %v283, %v282
        %v287 = vpack.c.b16 %v285, %v284
        %vm290 = vcmask 261120
        %v292 = vsel %vm290, %v266, 0
        %294 = vmatprep.subr.bf16.mxu0 0
        %295 = vmatpush1.bf16.msra.mxu0 %v286
        %296 = vmatprep.subr.bf16.mxu0 0
        %297 = vmatpush1.bf16.msra.mxu0 %v287
        %298 = vmatprep.subr.bf16.mxu0 0
        %299 = vmatpush1.bf16.msra.mxu0 0
        %300 = vmatprep.subr.bf16.mxu0 0
        %301 = vmatpush1.bf16.msra.mxu0 0
        %302 = vmatprep.subr.bf16.mxu0 0
        %303 = vmatpush1.bf16.msra.mxu0 0
        %304 = vmatprep.subr.bf16.mxu0 0
        %305 = vmatpush1.bf16.msra.mxu0 0
        %306 = vmatprep.subr.bf16.mxu0 0
        %307 = vmatpush1.bf16.msra.mxu0 0
        %308 = vmatprep.subr.bf16.mxu0 0
        %309 = vmatpush1.bf16.msra.mxu0 0
        %310 = vmatprep.subr.bf16.mxu0 0
        %311 = vmatpush1.bf16.msra.mxu0 0
        %312 = vmatprep.subr.bf16.mxu0 0
        %313 = vmatpush1.bf16.msra.mxu0 0
        %314 = vmatprep.subr.bf16.mxu0 0
        %315 = vmatpush1.bf16.msra.mxu0 0
        %316 = vmatprep.subr.bf16.mxu0 0
        %317 = vmatpush1.bf16.msra.mxu0 0
        %318 = vmatprep.subr.bf16.mxu0 0
        %319 = vmatpush1.bf16.msra.mxu0 0
        %320 = vmatprep.subr.bf16.mxu0 0
        %321 = vmatpush1.bf16.msra.mxu0 0
        %322 = vmatprep.subr.bf16.mxu0 0
        %323 = vmatpush1.bf16.msra.mxu0 0
        %324 = vmatprep.subr.bf16.mxu0 0
        %325 = vmatpush1.bf16.msra.mxu0 0
        %326 = vmatprep.mubr.bf16.mxu0 0
        %327 = vmatmul.mubr.bf16.gmra.mrb[0].mxu0 %v292
        %v328 = vpop.f32.mrb[0].mxu0
        %v329 = vadd.f32 %v277, %v328
        %v330 = vpop.f32.mrb[0].mxu0
        %v331 = vpop.f32.mrb[0].mxu0
        %v332 = vpop.f32.mrb[0].mxu0
        %333 = vdwg.mxu0
        %v334 = vld [vmem:[%s230] sm:$0xff]
        %v335 = vadd.f32 %v329, %v334
        %v336 = vsel %vm290, %v335, 0.0
        %337 = vadd.xlane.f32.xlu0 %v336
        %v338 = vpop.xlane.xlu0 %337
        %v339 = vrcp.pop 32.0
        %v340 = vmul.f32 %v338, %v339
        %v341 = vsub.f32 %v335, %v340
        %v342 = vmul.f32 %v341, %v341
        %v343 = vsel %vm290, %v342, 0.0
        %344 = vadd.xlane.f32.xlu0 %v343
        %v345 = vpop.xlane.xlu0 %344
        %v346 = vmul.f32 %v345, %v339
        %v347 = vadd.f32 %v346, 1e-12
        %v348 = vrsqrt.pop %v347
        %v349 = vmul.f32 %v341, %v348
        %v350 = vlaneseq
        %v351 = vshrl.u32 %v350, 7
        %v352 = vsub.s32 0, %v351
        %v353 = vrot.slane %v272, %v352
        %v354 = vmul.f32 %v349, %v353
        %v355 = vlaneseq
        %v356 = vshrl.u32 %v355, 7
        %v357 = vsub.s32 0, %v356
        %v358 = vrot.slane %v273, %v357
        %v359 = vadd.f32 %v354, %v358
        %360 = vst.msk [vmem:[%s263] sm:$0xff] %vm290, %v359
        %s361 = sand.u32 %s126, 1
        %s362 = scalar_lea.sflag [#allocation4], %s361
        %s363 = sand.u32 %s126, 1
        %s364 = smul.addr %s363, 8
        %s365 = scalar_lea.vmem [#allocation8], %s364
        // Predicated region
        $region49: #{tpu_custom_call.1} parent=35 // pred_check
          %p366 = pneg %p136
        $region50: #{tpu_custom_call.1} parent=35 // pred_check_branch
          %368 = sbr.rel (%p366) target = $region52
        $region51: #{tpu_custom_call.1} parent=35 // pred_region
          %s370 = ssub.s32 128, 128
          %371 = vsyncadd %s362, %s370
          %s372 = smul.addr %s24, 128
          %s373 = scalar_lea.hbm %s4, %s372
          %s375 = sshll.u32 %s365, 4
          %s376 = int_to_ptr.vmem [resolvable:$true] %s375
          %378 = dma.vmem_to_hbm [thread:$0]  %s376, 128, %s373, %s362
        $region52: #{tpu_custom_call.1} parent=35 // pred_fallthru
          _
      $region36: #{tpu_custom_call.1} parent=5 // pred_fallthru
        _
      %p379 = scmp.le.s32.totalorder 2, %s19
      // Predicated region
      $region53: #{tpu_custom_call.1} parent=5 // pred_check
        %p380 = pneg %p379
      $region54: #{tpu_custom_call.1} parent=5 // pred_check_branch
        %382 = sbr.rel (%p380) target = $region56
      $region55: #{tpu_custom_call.1} parent=5 // pred_region
        %s383 = ssub.s32 %s19, 2
        // Predicated region
        $region57: #{tpu_custom_call.1} parent=55 // pred_check
          %p384 = pneg %p142
        $region58: #{tpu_custom_call.1} parent=55 // pred_check_branch
          %386 = sbr.rel (%p384) target = $region60
        $region59: #{tpu_custom_call.1} parent=55 // pred_region
          %s387 = sand.u32 %s127, 1
          %s388 = scalar_lea.sflag [#allocation4], %s387
          %s389 = sand.u32 %s127, 1
          %s390 = smul.addr %s389, 8
          %s391 = scalar_lea.vmem [#allocation8], %s390
          %392 = dma.done %s388, 128
        $region60: #{tpu_custom_call.1} parent=55 // pred_fallthru
          _
      $region56: #{tpu_custom_call.1} parent=5 // pred_fallthru
        _
    $region6: #{tpu_custom_call.1} parent=1 // loop_footer
      %s23 = sadd.s32 1, %s19
    $region7: #{tpu_custom_call.1} parent=1 // loop_footer_branch
      %18 = sbr.rel target = $region3
    $region8: #{tpu_custom_call.1} parent=1 // loop_exit
      _
    %393 = vsyncpa [#allocation3], 1
    %s394 = scalar_lea.sflag [#allocation3], 1
    %395 = vsyncpa %s394, 1
    %396 = vsyncpa [#allocation6], 1
    %s397 = scalar_lea.sflag [#allocation6], 1
    %398 = vsyncpa %s397, 1
    %399 = vsyncpa [#allocation4], 1
    %s400 = scalar_lea.sflag [#allocation4], 1
    %401 = vsyncpa %s400, 1

</llo_original>
